<compile_context>
chip_gen: v6e
topology: v6e:2x2x1
jax: 0.10.0
libtpu: 0.0.40
codegen_flags: <defaults>
</compile_context>

<pallas_src>
import math

import jax
import jax.numpy as jnp
from jax.experimental import pallas as pl
from jax.experimental.pallas import tpu as pltpu


def _round_up(x: int, m: int) -> int:
    return ((x + m - 1) // m) * m


def _cdiv(a: int, b: int) -> int:
    return (a + b - 1) // b


def _bilinear_kernel(q_ref, p_ref, P_ref, Q_ref, o_ref):
    """One batch tile.

    q_ref, p_ref : (TB, D)  embedding tiles (input dtype)
    P_ref, Q_ref : (D, R)   projection weights, f32, VMEM-resident
    o_ref        : (TB, 1)  per-row scores column for this tile
    """
    # Match PyTorch semantics: cast embeddings to f32 before the matmuls
    # (no-op when the inputs are already f32).
    q = q_ref[...].astype(jnp.float32)
    p = p_ref[...].astype(jnp.float32)

    q_proj = jnp.dot(q, P_ref[...], preferred_element_type=jnp.float32)  # (TB, R)
    p_proj = jnp.dot(p, Q_ref[...], preferred_element_type=jnp.float32)  # (TB, R)

    # Elementwise product (VPU) + lane reduction (XLU); keepdims -> (TB, 1)
    o_ref[...] = jnp.sum(q_proj * p_proj, axis=1, keepdims=True)


def low_rank_bilinear(query_embed, passage_embed, P, Q, *, block_b=None,
                      vmem_budget_bytes=20 * 1024 * 1024):
    """Pallas implementation of LowRankBilinearModel.forward -> scores [B]."""
    B, D = query_embed.shape
    Dp, R = P.shape
    assert Dp == D and Q.shape == (D, R)
    assert passage_embed.shape == (B, D)

    P = P.astype(jnp.float32)
    Q = Q.astype(jnp.float32)

    in_itemsize = jnp.dtype(query_embed.dtype).itemsize

    # --- batch tile selection -------------------------------------------
    if block_b is None:
        # Per-row VMEM bytes: 2 inputs x 2 pipeline buffers x D x itemsize
        # + in-kernel f32 temporaries (two casts, two proj, prod, score)
        # + double-buffered (row, 1) output.
        per_row = 4 * D * in_itemsize + (2 * D + 3 * R + 1) * 4 + 8
        tb = int(vmem_budget_bytes // per_row)
        tb = max(8, min(tb - tb % 8, 32768))
    else:
        tb = _round_up(int(block_b), 8)           # robustness: sublane multiple
    tb = min(tb, _round_up(B, 8))                 # don't over-tile tiny batches

    num_tiles = _cdiv(B, tb)
    # Prefer an even tile count (v7x: 2 TensorCores split the parallel axis).
    if block_b is None and num_tiles > 1 and num_tiles % 2 == 1:
        tb = max(8, _round_up(_cdiv(B, num_tiles + 1), 8))
        num_tiles = _cdiv(B, tb)

    # --- cost hint -------------------------------------------------------
    cost = pl.CostEstimate(
        flops=4 * B * D * R + 2 * B * R,
        transcendentals=0,
        bytes_accessed=2 * B * D * in_itemsize + 2 * D * R * 4 + B * 4,
    )

    out = pl.pallas_call(
        _bilinear_kernel,
        out_shape=jax.ShapeDtypeStruct((B, 1), jnp.float32),
        grid=(num_tiles,),
        in_specs=[
            pl.BlockSpec((tb, D), lambda i: (i, 0)),   # query tile
            pl.BlockSpec((tb, D), lambda i: (i, 0)),   # passage tile
            pl.BlockSpec((D, R), lambda i: (0, 0)),    # P, resident
            pl.BlockSpec((D, R), lambda i: (0, 0)),    # Q, resident
        ],
        out_specs=pl.BlockSpec((tb, 1), lambda i: (i, 0)),
        compiler_params=pltpu.CompilerParams(
            dimension_semantics=("parallel",),         # megacore on v7x
            vmem_limit_bytes=40 * 1024 * 1024,         # > 16/32 MiB scoped defaults,
        ),                                             # headroom vs v7x 64 MiB phys
        cost_estimate=cost,
    )(query_embed, passage_embed, P, Q)

    return out.reshape(B)


def xavier_uniform(key, shape, dtype=jnp.float32):
    """Deterministic stand-in for nn.init.xavier_uniform_ on [fan_in, fan_out]."""
    fan_in, fan_out = shape
    bound = math.sqrt(6.0 / (fan_in + fan_out))
    return jax.random.uniform(key, shape, dtype=dtype, minval=-bound, maxval=bound)


if __name__ == "__main__":
    # Config consistent with the module: embedding_dim=32, rank=8.
    embedding_dim = 32
    rank = 8
    batch = 200   # not a tile multiple -> exercises the partial last block (no pad)

    key = jax.random.PRNGKey(0)
    k_p, k_q, k_qe, k_pe = jax.random.split(key, 4)

    P = xavier_uniform(k_p, (embedding_dim, rank))
    Q = xavier_uniform(k_q, (embedding_dim, rank))

    query_embed = jax.random.normal(k_qe, (batch, embedding_dim), dtype=jnp.float32)
    passage_embed = jax.random.normal(k_pe, (batch, embedding_dim), dtype=jnp.float32)

    # Reference in plain JAX (same math as the PyTorch forward).
    ref = jnp.sum((query_embed @ P) * (passage_embed @ Q), axis=1)

    # Multi-tile path: block_b=128 -> 2 grid steps, partial last block, no pad.
    scores = low_rank_bilinear(query_embed, passage_embed, P, Q, block_b=128)
    scores = jax.block_until_ready(scores)
    assert scores.shape == (batch,)
    assert jnp.allclose(scores, ref, rtol=1e-5, atol=1e-4), float(
        jnp.max(jnp.abs(scores - ref)))

    # Auto (VMEM-budgeted) tile path: single tile at this toy batch size.
    scores2 = jax.block_until_ready(
        low_rank_bilinear(query_embed, passage_embed, P, Q))
    assert jnp.allclose(scores2, ref, rtol=1e-5, atol=1e-4), float(
        jnp.max(jnp.abs(scores2 - ref)))

    print("KERNEL_OK")
</pallas_src>

<mosaic_0001>
module attributes {stable_mosaic.version = 11 : i64} {
  func.func @_bilinear_kernel(%arg0: i32, %arg1: memref<128x32xf32, #tpu.memory_space<vmem>>, %arg2: memref<128x32xf32, #tpu.memory_space<vmem>>, %arg3: memref<32x8xf32, #tpu.memory_space<vmem>>, %arg4: memref<32x8xf32, #tpu.memory_space<vmem>>, %arg5: memref<128x1xf32, #tpu.memory_space<vmem>>) attributes {dimension_semantics = [#tpu.dimension_semantics<parallel>], iteration_bounds = array<i64: 2>, scalar_prefetch = 0 : i64, scratch_operands = 0 : i64, tpu.core_type = #tpu.core_type<tc>, window_params = [{transform_indices = @transform_0, window_bounds = array<i64: 128, 32>}, {transform_indices = @transform_1, window_bounds = array<i64: 128, 32>}, {pipeline_mode = #tpu.pipeline_mode<synchronous>, transform_indices = @transform_2, window_bounds = array<i64: 32, 8>}, {pipeline_mode = #tpu.pipeline_mode<synchronous>, transform_indices = @transform_3, window_bounds = array<i64: 32, 8>}, {transform_indices = @transform_4, window_bounds = array<i64: 128, 1>}]} {
    %c0 = arith.constant 0 : index
    %c0_0 = arith.constant 0 : index
    %0 = vector.load %arg1[%c0, %c0_0] : memref<128x32xf32, #tpu.memory_space<vmem>>, vector<128x32xf32>
    %c0_1 = arith.constant 0 : index
    %c0_2 = arith.constant 0 : index
    %1 = vector.load %arg2[%c0_1, %c0_2] : memref<128x32xf32, #tpu.memory_space<vmem>>, vector<128x32xf32>
    %c0_3 = arith.constant 0 : index
    %c0_4 = arith.constant 0 : index
    %2 = vector.load %arg3[%c0_3, %c0_4] : memref<32x8xf32, #tpu.memory_space<vmem>>, vector<32x8xf32>
    %cst = arith.constant dense<0.000000e+00> : vector<128x8xf32>
    %3 = tpu.matmul %0, %2, %cst {dimension_numbers = #tpu.dot_dimension_numbers<[1], [0], [0], [1], [0, 0, 1, 1], [], []>} : vector<128x32xf32>, vector<32x8xf32>, vector<128x8xf32> -> vector<128x8xf32>
    %c0_5 = arith.constant 0 : index
    %c0_6 = arith.constant 0 : index
    %4 = vector.load %arg4[%c0_5, %c0_6] : memref<32x8xf32, #tpu.memory_space<vmem>>, vector<32x8xf32>
    %cst_7 = arith.constant dense<0.000000e+00> : vector<128x8xf32>
    %5 = tpu.matmul %1, %4, %cst_7 {dimension_numbers = #tpu.dot_dimension_numbers<[1], [0], [0], [1], [0, 0, 1, 1], [], []>} : vector<128x32xf32>, vector<32x8xf32>, vector<128x8xf32> -> vector<128x8xf32>
    %6 = arith.mulf %3, %5 : vector<128x8xf32>
    %cst_8 = arith.constant dense<0.000000e+00> : vector<128xf32>
    %7 = vector.multi_reduction <add>, %6, %cst_8 [1] : vector<128x8xf32> to vector<128xf32>
    %8 = vector.shape_cast %7 : vector<128xf32> to vector<128x1xf32>
    %c0_9 = arith.constant 0 : index
    %c0_10 = arith.constant 0 : index
    %9 = vector.load %arg5[%c0_9, %c0_10] : memref<128x1xf32, #tpu.memory_space<vmem>>, vector<128x1xf32>
    tpu.vector_store %arg5[%c0_9, %c0_10], %8 {strides = array<i32>} : memref<128x1xf32, #tpu.memory_space<vmem>>, vector<128x1xf32>,
    return
  }
  func.func @transform_0(%arg0: i32) -> (i32, i32) {
    %c0_i32 = arith.constant 0 : i32
    %c0_i32_0 = arith.constant 0 : i32
    return %arg0, %c0_i32 : i32, i32
  }
  func.func @transform_1(%arg0: i32) -> (i32, i32) {
    %c0_i32 = arith.constant 0 : i32
    %c0_i32_0 = arith.constant 0 : i32
    return %arg0, %c0_i32 : i32, i32
  }
  func.func @transform_2(%arg0: i32) -> (i32, i32) {
    %c0_i32 = arith.constant 0 : i32
    %c0_i32_0 = arith.constant 0 : i32
    %c0_i32_1 = arith.constant 0 : i32
    return %c0_i32, %c0_i32_0 : i32, i32
  }
  func.func @transform_3(%arg0: i32) -> (i32, i32) {
    %c0_i32 = arith.constant 0 : i32
    %c0_i32_0 = arith.constant 0 : i32
    %c0_i32_1 = arith.constant 0 : i32
    return %c0_i32, %c0_i32_0 : i32, i32
  }
  func.func @transform_4(%arg0: i32) -> (i32, i32) {
    %c0_i32 = arith.constant 0 : i32
    %c0_i32_0 = arith.constant 0 : i32
    return %arg0, %c0_i32 : i32, i32
  }
}

</mosaic_0001>

<llo_original>
// kernel: tpu_custom_call.1
$region0: #{tpu_custom_call.1}
  #allocation0 [shape = 'u32[]', space=smem, size = 0x4, offset = 0x4, fixed_abs, tag = 'smem constant byte address 0x4 - core index']
  #allocation1 [shape = 'u32[144,128]{1,0:T(1,128)}', space=vmem, size = 0x12000, scoped, tag = 'internal scratch']
  %s0 = inlined_call_operand.vmem [shape: f32[200,32], index: 0, kind: input, shape index: {}]
  %s1 = inlined_call_operand.vmem [shape: f32[200,32], index: 1, kind: input, shape index: {}]
  %s2 = inlined_call_operand.vmem [shape: f32[32,8], index: 2, kind: input, shape index: {}]
  %s3 = inlined_call_operand.vmem [shape: f32[32,8], index: 3, kind: input, shape index: {}]
  %s4 = inlined_call_operand.vmem [shape: f32[200,1], index: 4, kind: output, shape index: {}]
  %s5 = sld [smem:[#allocation0]]
  $region97: #{tpu_custom_call.1} parent=0
    _
  %s7 = ssub.s32 1, %s5
  %s8 = scalar_select 0, %s7, %s5
  $region1: #{tpu_custom_call.1} parent=0
    #allocation2 [shape = 'u8[131072]{0}', space=vmem, size = 0x20000, scoped, tag = 'output window, operand 0']
    loop: start=0, step=1, limit=4
    $region2: #{tpu_custom_call.1} parent=1 // loop_pre_header
      _
    $region3: #{tpu_custom_call.1} parent=1 // loop_header
      %s10 = sphi 0, %s14
      %p11 = scmp.ge.s32.totalorder %s10, 4
      %s20 = sphi 0, %s22
      %s23 = sphi 0, %s20
      %s24 = sphi 0, %s23
      %s40 = sphi 0, %s24
      %s46 = sphi 0, %s48
      %s49 = sphi 0, %s46
      %s50 = sphi 0, %s49
      %s66 = sphi 0, %s50
      %s70 = sphi 0, %s70
      %s72 = sphi 0, %s70
      %s73 = sphi 0, %s72
      %s87 = sphi 0, %s73
      %s91 = sphi 0, %s91
      %s93 = sphi 0, %s91
      %s94 = sphi 0, %s93
      %s108 = sphi 0, %s94
      %s114 = sphi 0, %s116
      %s117 = sphi 0, %s114
      %s118 = sphi 0, %s117
      %s134 = sphi 0, %s118
    $region4: #{tpu_custom_call.1} parent=1 // loop_header_branch
      %13 = sbr.rel (%p11) target = $region8
    $region5: #{tpu_custom_call.1} parent=1 // loop_body
      %s15 = ssub.s32 %s10, 1
      %s16 = ssub.s32 %s10, 2
      %s17 = sadd.s32 %s10, 1
      %s18 = ssub.s32 %s10, %s17
      %p19 = scmp.eq.s32.totalorder %s18, 0
      %s21 = sadd.s32 %s20, 1
      %s22 = scalar_select %p19, %s20, %s21
      %p25 = pneg %p19
      %p26 = scmp.eq.s32.totalorder %s10, 1
      %p27 = por %p25, %p26
      %p28 = scmp.ne.s32.totalorder %s20, %s23
      %p29 = scmp.eq.s32.totalorder %s10, 0
      %p30 = por %p28, %p29
      %p31 = scmp.ne.s32.totalorder %s20, %s23
      %p32 = scmp.eq.s32.totalorder %s15, 1
      %p33 = por %p31, %p32
      %p34 = scmp.ne.s32.totalorder %s23, %s24
      %p35 = scmp.eq.s32.totalorder %s15, 0
      %p36 = por %p34, %p35
      %p37 = scmp.ne.s32.totalorder %s23, %s24
      %p38 = scmp.eq.s32.totalorder %s16, 1
      %p39 = por %p37, %p38
      %p41 = scmp.ne.s32.totalorder %s24, %s40
      %p42 = scmp.eq.s32.totalorder %s16, 0
      %p43 = por %p41, %p42
      %s44 = ssub.s32 %s10, %s17
      %p45 = scmp.eq.s32.totalorder %s44, 0
      %s47 = sadd.s32 %s46, 1
      %s48 = scalar_select %p45, %s46, %s47
      %p51 = pneg %p45
      %p52 = scmp.eq.s32.totalorder %s10, 1
      %p53 = por %p51, %p52
      %p54 = scmp.ne.s32.totalorder %s46, %s49
      %p55 = scmp.eq.s32.totalorder %s10, 0
      %p56 = por %p54, %p55
      %p57 = scmp.ne.s32.totalorder %s46, %s49
      %p58 = scmp.eq.s32.totalorder %s15, 1
      %p59 = por %p57, %p58
      %p60 = scmp.ne.s32.totalorder %s49, %s50
      %p61 = scmp.eq.s32.totalorder %s15, 0
      %p62 = por %p60, %p61
      %p63 = scmp.ne.s32.totalorder %s49, %s50
      %p64 = scmp.eq.s32.totalorder %s16, 1
      %p65 = por %p63, %p64
      %p67 = scmp.ne.s32.totalorder %s50, %s66
      %p68 = scmp.eq.s32.totalorder %s16, 0
      %p69 = por %p67, %p68
      %s71 = sadd.s32 %s70, 1
      %p74 = scmp.eq.s32.totalorder %s10, 1
      %p75 = scmp.ne.s32.totalorder %s70, %s72
      %p76 = scmp.eq.s32.totalorder %s10, 0
      %p77 = por %p75, %p76
      %p78 = scmp.ne.s32.totalorder %s70, %s72
      %p79 = scmp.eq.s32.totalorder %s15, 1
      %p80 = por %p78, %p79
      %p81 = scmp.ne.s32.totalorder %s72, %s73
      %p82 = scmp.eq.s32.totalorder %s15, 0
      %p83 = por %p81, %p82
      %p84 = scmp.ne.s32.totalorder %s72, %s73
      %p85 = scmp.eq.s32.totalorder %s16, 1
      %p86 = por %p84, %p85
      %p88 = scmp.ne.s32.totalorder %s73, %s87
      %p89 = scmp.eq.s32.totalorder %s16, 0
      %p90 = por %p88, %p89
      %s92 = sadd.s32 %s91, 1
      %p95 = scmp.eq.s32.totalorder %s10, 1
      %p96 = scmp.ne.s32.totalorder %s91, %s93
      %p97 = scmp.eq.s32.totalorder %s10, 0
      %p98 = por %p96, %p97
      %p99 = scmp.ne.s32.totalorder %s91, %s93
      %p100 = scmp.eq.s32.totalorder %s15, 1
      %p101 = por %p99, %p100
      %p102 = scmp.ne.s32.totalorder %s93, %s94
      %p103 = scmp.eq.s32.totalorder %s15, 0
      %p104 = por %p102, %p103
      %p105 = scmp.ne.s32.totalorder %s93, %s94
      %p106 = scmp.eq.s32.totalorder %s16, 1
      %p107 = por %p105, %p106
      %p109 = scmp.ne.s32.totalorder %s94, %s108
      %p110 = scmp.eq.s32.totalorder %s16, 0
      %p111 = por %p109, %p110
      %s112 = ssub.s32 %s10, %s17
      %p113 = scmp.eq.s32.totalorder %s112, 0
      %s115 = sadd.s32 %s114, 1
      %s116 = scalar_select %p113, %s114, %s115
      %p119 = pneg %p113
      %p120 = scmp.eq.s32.totalorder %s10, 1
      %p121 = por %p119, %p120
      %p122 = scmp.ne.s32.totalorder %s114, %s117
      %p123 = scmp.eq.s32.totalorder %s10, 0
      %p124 = por %p122, %p123
      %p125 = scmp.ne.s32.totalorder %s114, %s117
      %p126 = scmp.eq.s32.totalorder %s15, 1
      %p127 = por %p125, %p126
      %p128 = scmp.ne.s32.totalorder %s117, %s118
      %p129 = scmp.eq.s32.totalorder %s15, 0
      %p130 = por %p128, %p129
      %p131 = scmp.ne.s32.totalorder %s117, %s118
      %p132 = scmp.eq.s32.totalorder %s16, 1
      %p133 = por %p131, %p132
      %p135 = scmp.ne.s32.totalorder %s118, %s134
      %p136 = scmp.eq.s32.totalorder %s16, 0
      %p137 = por %p135, %p136
      %p138 = scmp.le.s32.totalorder 1, %s10
      %p139 = scmp.lt.s32.totalorder %s10, 3
      %p140 = pnand %p138, %p139
      %p141 = pneg %p140
      // Predicated region
      $region9: #{tpu_custom_call.1} parent=5 // pred_check
        _
      $region10: #{tpu_custom_call.1} parent=5 // pred_check_branch
        %143 = sbr.rel (%p140) target = $region12
      $region11: #{tpu_custom_call.1} parent=5 // pred_region
        %s144 = ssub.s32 %s10, 1
        // Predicated region
        $region13: #{tpu_custom_call.1} parent=11 // pred_check
          %p145 = pneg %p83
        $region14: #{tpu_custom_call.1} parent=11 // pred_check_branch
          %147 = sbr.rel (%p145) target = $region16
        $region15: #{tpu_custom_call.1} parent=11 // pred_region
          _
        $region16: #{tpu_custom_call.1} parent=11 // pred_fallthru
          _
        // Predicated region
        $region17: #{tpu_custom_call.1} parent=11 // pred_check
          %p148 = pneg %p104
        $region18: #{tpu_custom_call.1} parent=11 // pred_check_branch
          %150 = sbr.rel (%p148) target = $region20
        $region19: #{tpu_custom_call.1} parent=11 // pred_region
          _
        $region20: #{tpu_custom_call.1} parent=11 // pred_fallthru
          _
      $region12: #{tpu_custom_call.1} parent=5 // pred_fallthru
        _
      %p151 = scmp.lt.s32.totalorder %s10, 2
      // Predicated region
      $region21: #{tpu_custom_call.1} parent=5 // pred_check
        %p152 = pneg %p151
      $region22: #{tpu_custom_call.1} parent=5 // pred_check_branch
        %154 = sbr.rel (%p152) target = $region24
      $region23: #{tpu_custom_call.1} parent=5 // pred_region
        // Predicated region
        $region25: #{tpu_custom_call.1} parent=23 // pred_check
          %p155 = pneg %p30
        $region26: #{tpu_custom_call.1} parent=23 // pred_check_branch
          %157 = sbr.rel (%p155) target = $region28
        $region27: #{tpu_custom_call.1} parent=23 // pred_region
          %s158 = smul.u32 16, %s10
          %s159 = ssub.s32 25, %s158
          %p160 = scmp.lt.s32.totalorder %s159, 16
          %s161 = scalar_select %p160, %s159, 16
          %s162 = smul.u32 128, %s161
          %p163 = scmp.lt.s32.totalorder %s158, 24
          %s164 = scalar_select %p163, %s158, 24
          %s165 = smul.addr %s164, 8
          %s166 = scalar_lea.vmem %s0, %s165
          %s167 = smul.u32 16, %s10
          %s168 = ssub.s32 25, %s167
          %p169 = scmp.lt.s32.totalorder %s168, 16
          %s170 = scalar_select %p169, %s168, 16
          %s171 = smul.u32 128, %s170
        $region28: #{tpu_custom_call.1} parent=23 // pred_fallthru
          _
        // Predicated region
        $region29: #{tpu_custom_call.1} parent=23 // pred_check
          %p172 = pneg %p56
        $region30: #{tpu_custom_call.1} parent=23 // pred_check_branch
          %174 = sbr.rel (%p172) target = $region32
        $region31: #{tpu_custom_call.1} parent=23 // pred_region
          %s175 = smul.u32 16, %s10
          %s176 = ssub.s32 25, %s175
          %p177 = scmp.lt.s32.totalorder %s176, 16
          %s178 = scalar_select %p177, %s176, 16
          %s179 = smul.u32 128, %s178
          %p180 = scmp.lt.s32.totalorder %s175, 24
          %s181 = scalar_select %p180, %s175, 24
          %s182 = smul.addr %s181, 8
          %s183 = scalar_lea.vmem %s1, %s182
          %s184 = smul.u32 16, %s10
          %s185 = ssub.s32 25, %s184
          %p186 = scmp.lt.s32.totalorder %s185, 16
          %s187 = scalar_select %p186, %s185, 16
          %s188 = smul.u32 128, %s187
        $region32: #{tpu_custom_call.1} parent=23 // pred_fallthru
          _
      $region24: #{tpu_custom_call.1} parent=5 // pred_fallthru
        _
      %p189 = scmp.le.s32.totalorder 1, %s10
      %p190 = scmp.lt.s32.totalorder %s10, 3
      %p191 = pnand %p189, %p190
      %p192 = pneg %p191
      // Predicated region
      $region33: #{tpu_custom_call.1} parent=5 // pred_check
        _
      $region34: #{tpu_custom_call.1} parent=5 // pred_check_branch
        %194 = sbr.rel (%p191) target = $region36
      $region35: #{tpu_custom_call.1} parent=5 // pred_region
        %s195 = ssub.s32 %s10, 1
        %s196 = smul.u32 16, %s15
        %s197 = ssub.s32 25, %s196
        %p198 = scmp.lt.s32.totalorder %s197, 16
        %s199 = scalar_select %p198, %s197, 16
        %s200 = smul.u32 128, %s199
        %p201 = scmp.lt.s32.totalorder %s196, 24
        %s202 = scalar_select %p201, %s196, 24
        %s203 = smul.addr %s202, 8
        %s204 = scalar_lea.vmem %s0, %s203
        %p205 = pneg %p36
        %p206 = pneg %p33
        %s207 = smul.u32 16, %s15
        %s208 = ssub.s32 25, %s207
        %p209 = scmp.lt.s32.totalorder %s208, 16
        %s210 = scalar_select %p209, %s208, 16
        %s211 = smul.u32 128, %s210
        %p212 = scmp.lt.s32.totalorder %s207, 24
        %s213 = scalar_select %p212, %s207, 24
        %s214 = smul.addr %s213, 8
        %s215 = scalar_lea.vmem %s1, %s214
        %p216 = pneg %p62
        %p217 = pneg %p59
        %p218 = pneg %p83
        %p219 = pneg %p80
        %p220 = pneg %p104
        %p221 = pneg %p101
        %p222 = pneg %p130
        %p223 = pneg %p127
        %s224 = sand.u32 %s117, 1
        %s225 = sand.u32 %s117, 1
        %s226 = smul.addr %s225, 128
        %s227 = scalar_lea.vmem [#allocation2], %s226
        %s228 = smul.u32 16, %s15
        %s229 = ssub.s32 25, %s228
        %p230 = scmp.lt.s32.totalorder %s229, 16
        %s231 = scalar_select %p230, %s229, 16
        %s232 = smul.u32 128, %s231
        %p233 = scmp.lt.s32.totalorder %s228, 24
        %s234 = scalar_select %p233, %s228, 24
        %s235 = smul.addr %s234, 8
        %s236 = scalar_lea.vmem %s0, %s235
        %s237 = smul.u32 16, %s15
        %s238 = ssub.s32 25, %s237
        %p239 = scmp.lt.s32.totalorder %s238, 16
        %s240 = scalar_select %p239, %s238, 16
        %s241 = smul.u32 128, %s240
        %s242 = smul.u32 16, %s15
        %s243 = ssub.s32 25, %s242
        %p244 = scmp.lt.s32.totalorder %s243, 16
        %s245 = scalar_select %p244, %s243, 16
        %s246 = smul.u32 128, %s245
        %p247 = scmp.lt.s32.totalorder %s242, 24
        %s248 = scalar_select %p247, %s242, 24
        %s249 = smul.addr %s248, 8
        %s250 = scalar_lea.vmem %s1, %s249
        %s251 = smul.u32 16, %s15
        %s252 = ssub.s32 25, %s251
        %p253 = scmp.lt.s32.totalorder %s252, 16
        %s254 = scalar_select %p253, %s252, 16
        %s255 = smul.u32 128, %s254
        %s256 = smul.u32 16, %s15
        %s257 = ssub.s32 25, %s256
        %p258 = scmp.lt.s32.totalorder %s257, 16
        %s259 = scalar_select %p258, %s257, 16
        %s260 = smul.u32 128, %s259
        %v261 = vld [vmem:[%s236] sm:$0xff]
        %v262 = vld [vmem:[%s236 + $0x8] sm:$0xff]
        %v263 = vld [vmem:[%s236 + $0x10] sm:$0xff]
        %v264 = vld [vmem:[%s236 + $0x18] sm:$0xff]
        %v265 = vld [vmem:[%s236 + $0x20] sm:$0xff]
        %v266 = vld [vmem:[%s236 + $0x28] sm:$0xff]
        %v267 = vld [vmem:[%s236 + $0x30] sm:$0xff]
        %v268 = vld [vmem:[%s236 + $0x38] sm:$0xff]
        %v269 = vld [vmem:[%s236 + $0x40] sm:$0xff]
        %v270 = vld [vmem:[%s236 + $0x48] sm:$0xff]
        %v271 = vld [vmem:[%s236 + $0x50] sm:$0xff]
        %v272 = vld [vmem:[%s236 + $0x58] sm:$0xff]
        %v273 = vld [vmem:[%s236 + $0x60] sm:$0xff]
        %v274 = vld [vmem:[%s236 + $0x68] sm:$0xff]
        %v275 = vld [vmem:[%s236 + $0x70] sm:$0xff]
        %v276 = vld [vmem:[%s236 + $0x78] sm:$0xff]
        %v277 = vld [vmem:[%s250] sm:$0xff]
        %v278 = vld [vmem:[%s250 + $0x8] sm:$0xff]
        %v279 = vld [vmem:[%s250 + $0x10] sm:$0xff]
        %v280 = vld [vmem:[%s250 + $0x18] sm:$0xff]
        %v281 = vld [vmem:[%s250 + $0x20] sm:$0xff]
        %v282 = vld [vmem:[%s250 + $0x28] sm:$0xff]
        %v283 = vld [vmem:[%s250 + $0x30] sm:$0xff]
        %v284 = vld [vmem:[%s250 + $0x38] sm:$0xff]
        %v285 = vld [vmem:[%s250 + $0x40] sm:$0xff]
        %v286 = vld [vmem:[%s250 + $0x48] sm:$0xff]
        %v287 = vld [vmem:[%s250 + $0x50] sm:$0xff]
        %v288 = vld [vmem:[%s250 + $0x58] sm:$0xff]
        %v289 = vld [vmem:[%s250 + $0x60] sm:$0xff]
        %v290 = vld [vmem:[%s250 + $0x68] sm:$0xff]
        %v291 = vld [vmem:[%s250 + $0x70] sm:$0xff]
        %v292 = vld [vmem:[%s250 + $0x78] sm:$0xff]
        %v293 = vld [vmem:[%s2] sm:$0xff]
        %v294 = vld [vmem:[%s2 + $0x8] sm:$0xff]
        %v295 = vld [vmem:[%s2 + $0x10] sm:$0xff]
        %v296 = vld [vmem:[%s2 + $0x18] sm:$0xff]
        %vm297 = vcmask 261120
        %v299 = vsel %vm297, %v261, 0
        %v302 = vsel %vm297, %v262, 0
        %v305 = vsel %vm297, %v263, 0
        %v308 = vsel %vm297, %v264, 0
        %v311 = vsel %vm297, %v265, 0
        %v314 = vsel %vm297, %v266, 0
        %v317 = vsel %vm297, %v267, 0
        %v320 = vsel %vm297, %v268, 0
        %v323 = vsel %vm297, %v269, 0
        %v326 = vsel %vm297, %v270, 0
        %v329 = vsel %vm297, %v271, 0
        %v332 = vsel %vm297, %v272, 0
        %v335 = vsel %vm297, %v273, 0
        %v338 = vsel %vm297, %v274, 0
        %v341 = vsel %vm297, %v275, 0
        %v344 = vsel %vm297, %v276, 0
        %346 = vmatprep.subr.mxu0 0.0
        %347 = vmatpush1.msra.mxu0 0.0
        %348 = vmatprep.subr.mxu0 0.0
        %349 = vmatpush1.msra.mxu0 0.0
        %350 = vmatprep.subr.mxu0 0.0
        %351 = vmatpush1.msra.mxu0 0.0
        %352 = vmatprep.subr.mxu0 0.0
        %353 = vmatpush1.msra.mxu0 0.0
        %354 = vmatprep.subr.mxu0 0.0
        %355 = vmatpush1.msra.mxu0 0.0
        %356 = vmatprep.subr.mxu0 0.0
        %357 = vmatpush1.msra.mxu0 0.0
        %358 = vmatprep.subr.mxu0 0.0
        %359 = vmatpush1.msra.mxu0 0.0
        %360 = vmatprep.subr.mxu0 0.0
        %361 = vmatpush1.msra.mxu0 0.0
        %362 = vmatprep.subr.mxu0 0.0
        %363 = vmatpush1.msra.mxu0 0.0
        %364 = vmatprep.subr.mxu0 0.0
        %365 = vmatpush1.msra.mxu0 0.0
        %366 = vmatprep.subr.mxu0 0.0
        %367 = vmatpush1.msra.mxu0 0.0
        %368 = vmatprep.subr.mxu0 0.0
        %369 = vmatpush1.msra.mxu0 0.0
        %370 = vmatprep.subr.mxu0 0.0
        %371 = vmatpush1.msra.mxu0 %v296
        %372 = vmatprep.subr.mxu0 0.0
        %373 = vmatpush1.msra.mxu0 %v295
        %374 = vmatprep.subr.mxu0 0.0
        %375 = vmatpush1.msra.mxu0 %v294
        %376 = vmatprep.subr.mxu0 0.0
        %377 = vmatpush1.msra.mxu0 %v293
        %378 = vmatprep.subr.mxu0 0.0
        %379 = vmatpush2.msra.mxu0 0.0
        %380 = vmatprep.subr.mxu0 0.0
        %381 = vmatpush2.msra.mxu0 0.0
        %382 = vmatprep.subr.mxu0 0.0
        %383 = vmatpush2.msra.mxu0 0.0
        %384 = vmatprep.subr.mxu0 0.0
        %385 = vmatpush2.msra.mxu0 0.0
        %386 = vmatprep.subr.mxu0 0.0
        %387 = vmatpush2.msra.mxu0 0.0
        %388 = vmatprep.subr.mxu0 0.0
        %389 = vmatpush2.msra.mxu0 0.0
        %390 = vmatprep.subr.mxu0 0.0
        %391 = vmatpush2.msra.mxu0 0.0
        %392 = vmatprep.subr.mxu0 0.0
        %393 = vmatpush2.msra.mxu0 0.0
        %394 = vmatprep.subr.mxu0 0.0
        %395 = vmatpush2.msra.mxu0 0.0
        %396 = vmatprep.subr.mxu0 0.0
        %397 = vmatpush2.msra.mxu0 0.0
        %398 = vmatprep.subr.mxu0 0.0
        %399 = vmatpush2.msra.mxu0 0.0
        %400 = vmatprep.subr.mxu0 0.0
        %401 = vmatpush2.msra.mxu0 0.0
        %402 = vmatprep.subr.mxu0 0.0
        %403 = vmatpush2.msra.mxu0 0.0
        %404 = vmatprep.subr.mxu0 0.0
        %405 = vmatpush2.msra.mxu0 0.0
        %406 = vmatprep.subr.mxu0 0.0
        %407 = vmatpush2.msra.mxu0 0.0
        %408 = vmatprep.subr.mxu0 0.0
        %409 = vmatpush2.msra.mxu0 0.0
        %410 = vmatprep.mubr.f32.mxu0 0.0
        %411 = vmatmul.mubr.f32.gmra.mxu0 %v299
        %v412 = vpop.f32.mrf.mxu0
        %v413 = vadd.f32 0.0, %v412
        %v414 = vpop.f32.mrf.mxu0
        %415 = vmatprep.mubr.f32.mxu0 0.0
        %416 = vmatmul.mubr.f32.gmra.mxu0 %v302
        %v417 = vpop.f32.mrf.mxu0
        %v418 = vadd.f32 0.0, %v417
        %v419 = vpop.f32.mrf.mxu0
        %420 = vmatprep.mubr.f32.mxu0 0.0
        %421 = vmatmul.mubr.f32.gmra.mxu0 %v305
        %v422 = vpop.f32.mrf.mxu0
        %v423 = vadd.f32 0.0, %v422
        %v424 = vpop.f32.mrf.mxu0
        %425 = vmatprep.mubr.f32.mxu0 0.0
        %426 = vmatmul.mubr.f32.gmra.mxu0 %v308
        %v427 = vpop.f32.mrf.mxu0
        %v428 = vadd.f32 0.0, %v427
        %v429 = vpop.f32.mrf.mxu0
        %430 = vmatprep.mubr.f32.mxu0 0.0
        %431 = vmatmul.mubr.f32.gmra.mxu0 %v311
        %v432 = vpop.f32.mrf.mxu0
        %v433 = vadd.f32 0.0, %v432
        %v434 = vpop.f32.mrf.mxu0
        %435 = vmatprep.mubr.f32.mxu0 0.0
        %436 = vmatmul.mubr.f32.gmra.mxu0 %v314
        %v437 = vpop.f32.mrf.mxu0
        %v438 = vadd.f32 0.0, %v437
        %v439 = vpop.f32.mrf.mxu0
        %440 = vmatprep.mubr.f32.mxu0 0.0
        %441 = vmatmul.mubr.f32.gmra.mxu0 %v317
        %v442 = vpop.f32.mrf.mxu0
        %v443 = vadd.f32 0.0, %v442
        %v444 = vpop.f32.mrf.mxu0
        %445 = vmatprep.mubr.f32.mxu0 0.0
        %446 = vmatmul.mubr.f32.gmra.mxu0 %v320
        %v447 = vpop.f32.mrf.mxu0
        %v448 = vadd.f32 0.0, %v447
        %v449 = vpop.f32.mrf.mxu0
        %450 = vmatprep.mubr.f32.mxu0 0.0
        %451 = vmatmul.mubr.f32.gmra.mxu0 %v323
        %v452 = vpop.f32.mrf.mxu0
        %v453 = vadd.f32 0.0, %v452
        %v454 = vpop.f32.mrf.mxu0
        %455 = vmatprep.mubr.f32.mxu0 0.0
        %456 = vmatmul.mubr.f32.gmra.mxu0 %v326
        %v457 = vpop.f32.mrf.mxu0
        %v458 = vadd.f32 0.0, %v457
        %v459 = vpop.f32.mrf.mxu0
        %460 = vmatprep.mubr.f32.mxu0 0.0
        %461 = vmatmul.mubr.f32.gmra.mxu0 %v329
        %v462 = vpop.f32.mrf.mxu0
        %v463 = vadd.f32 0.0, %v462
        %v464 = vpop.f32.mrf.mxu0
        %465 = vmatprep.mubr.f32.mxu0 0.0
        %466 = vmatmul.mubr.f32.gmra.mxu0 %v332
        %v467 = vpop.f32.mrf.mxu0
        %v468 = vadd.f32 0.0, %v467
        %v469 = vpop.f32.mrf.mxu0
        %470 = vmatprep.mubr.f32.mxu0 0.0
        %471 = vmatmul.mubr.f32.gmra.mxu0 %v335
        %v472 = vpop.f32.mrf.mxu0
        %v473 = vadd.f32 0.0, %v472
        %v474 = vpop.f32.mrf.mxu0
        %475 = vmatprep.mubr.f32.mxu0 0.0
        %476 = vmatmul.mubr.f32.gmra.mxu0 %v338
        %v477 = vpop.f32.mrf.mxu0
        %v478 = vadd.f32 0.0, %v477
        %v479 = vpop.f32.mrf.mxu0
        %480 = vmatprep.mubr.f32.mxu0 0.0
        %481 = vmatmul.mubr.f32.gmra.mxu0 %v341
        %v482 = vpop.f32.mrf.mxu0
        %v483 = vadd.f32 0.0, %v482
        %v484 = vpop.f32.mrf.mxu0
        %485 = vmatprep.mubr.f32.mxu0 0.0
        %486 = vmatmul.mubr.f32.gmra.mxu0 %v344
        %v487 = vpop.f32.mrf.mxu0
        %v488 = vadd.f32 0.0, %v487
        %v489 = vpop.f32.mrf.mxu0
        %490 = vdwg.mxu0
        %v491 = vld [vmem:[%s3] sm:$0xff]
        %v492 = vld [vmem:[%s3 + $0x8] sm:$0xff]
        %v493 = vld [vmem:[%s3 + $0x10] sm:$0xff]
        %v494 = vld [vmem:[%s3 + $0x18] sm:$0xff]
        %v496 = vsel %vm297, %v277, 0
        %v499 = vsel %vm297, %v278, 0
        %v502 = vsel %vm297, %v279, 0
        %v505 = vsel %vm297, %v280, 0
        %v508 = vsel %vm297, %v281, 0
        %v511 = vsel %vm297, %v282, 0
        %v514 = vsel %vm297, %v283, 0
        %v517 = vsel %vm297, %v284, 0
        %v520 = vsel %vm297, %v285, 0
        %v523 = vsel %vm297, %v286, 0
        %v526 = vsel %vm297, %v287, 0
        %v529 = vsel %vm297, %v288, 0
        %v532 = vsel %vm297, %v289, 0
        %v535 = vsel %vm297, %v290, 0
        %v538 = vsel %vm297, %v291, 0
        %v541 = vsel %vm297, %v292, 0
        %543 = vmatprep.subr.mxu0 0.0
        %544 = vmatpush1.msra.mxu0 0.0
        %545 = vmatprep.subr.mxu0 0.0
        %546 = vmatpush1.msra.mxu0 0.0
        %547 = vmatprep.subr.mxu0 0.0
        %548 = vmatpush1.msra.mxu0 0.0
        %549 = vmatprep.subr.mxu0 0.0
        %550 = vmatpush1.msra.mxu0 0.0
        %551 = vmatprep.subr.mxu0 0.0
        %552 = vmatpush1.msra.mxu0 0.0
        %553 = vmatprep.subr.mxu0 0.0
        %554 = vmatpush1.msra.mxu0 0.0
        %555 = vmatprep.subr.mxu0 0.0
        %556 = vmatpush1.msra.mxu0 0.0
        %557 = vmatprep.subr.mxu0 0.0
        %558 = vmatpush1.msra.mxu0 0.0
        %559 = vmatprep.subr.mxu0 0.0
        %560 = vmatpush1.msra.mxu0 0.0
        %561 = vmatprep.subr.mxu0 0.0
        %562 = vmatpush1.msra.mxu0 0.0
        %563 = vmatprep.subr.mxu0 0.0
        %564 = vmatpush1.msra.mxu0 0.0
        %565 = vmatprep.subr.mxu0 0.0
        %566 = vmatpush1.msra.mxu0 0.0
        %567 = vmatprep.subr.mxu0 0.0
        %568 = vmatpush1.msra.mxu0 %v494
        %569 = vmatprep.subr.mxu0 0.0
        %570 = vmatpush1.msra.mxu0 %v493
        %571 = vmatprep.subr.mxu0 0.0
        %572 = vmatpush1.msra.mxu0 %v492
        %573 = vmatprep.subr.mxu0 0.0
        %574 = vmatpush1.msra.mxu0 %v491
        %575 = vmatprep.subr.mxu0 0.0
        %576 = vmatpush2.msra.mxu0 0.0
        %577 = vmatprep.subr.mxu0 0.0
        %578 = vmatpush2.msra.mxu0 0.0
        %579 = vmatprep.subr.mxu0 0.0
        %580 = vmatpush2.msra.mxu0 0.0
        %581 = vmatprep.subr.mxu0 0.0
        %582 = vmatpush2.msra.mxu0 0.0
        %583 = vmatprep.subr.mxu0 0.0
        %584 = vmatpush2.msra.mxu0 0.0
        %585 = vmatprep.subr.mxu0 0.0
        %586 = vmatpush2.msra.mxu0 0.0
        %587 = vmatprep.subr.mxu0 0.0
        %588 = vmatpush2.msra.mxu0 0.0
        %589 = vmatprep.subr.mxu0 0.0
        %590 = vmatpush2.msra.mxu0 0.0
        %591 = vmatprep.subr.mxu0 0.0
        %592 = vmatpush2.msra.mxu0 0.0
        %593 = vmatprep.subr.mxu0 0.0
        %594 = vmatpush2.msra.mxu0 0.0
        %595 = vmatprep.subr.mxu0 0.0
        %596 = vmatpush2.msra.mxu0 0.0
        %597 = vmatprep.subr.mxu0 0.0
        %598 = vmatpush2.msra.mxu0 0.0
        %599 = vmatprep.subr.mxu0 0.0
        %600 = vmatpush2.msra.mxu0 0.0
        %601 = vmatprep.subr.mxu0 0.0
        %602 = vmatpush2.msra.mxu0 0.0
        %603 = vmatprep.subr.mxu0 0.0
        %604 = vmatpush2.msra.mxu0 0.0
        %605 = vmatprep.subr.mxu0 0.0
        %606 = vmatpush2.msra.mxu0 0.0
        %607 = vmatprep.mubr.f32.mxu0 0.0
        %608 = vmatmul.mubr.f32.gmra.mxu0 %v496
        %v609 = vpop.f32.mrf.mxu0
        %v610 = vadd.f32 0.0, %v609
        %v611 = vpop.f32.mrf.mxu0
        %612 = vmatprep.mubr.f32.mxu0 0.0
        %613 = vmatmul.mubr.f32.gmra.mxu0 %v499
        %v614 = vpop.f32.mrf.mxu0
        %v615 = vadd.f32 0.0, %v614
        %v616 = vpop.f32.mrf.mxu0
        %617 = vmatprep.mubr.f32.mxu0 0.0
        %618 = vmatmul.mubr.f32.gmra.mxu0 %v502
        %v619 = vpop.f32.mrf.mxu0
        %v620 = vadd.f32 0.0, %v619
        %v621 = vpop.f32.mrf.mxu0
        %622 = vmatprep.mubr.f32.mxu0 0.0
        %623 = vmatmul.mubr.f32.gmra.mxu0 %v505
        %v624 = vpop.f32.mrf.mxu0
        %v625 = vadd.f32 0.0, %v624
        %v626 = vpop.f32.mrf.mxu0
        %627 = vmatprep.mubr.f32.mxu0 0.0
        %628 = vmatmul.mubr.f32.gmra.mxu0 %v508
        %v629 = vpop.f32.mrf.mxu0
        %v630 = vadd.f32 0.0, %v629
        %v631 = vpop.f32.mrf.mxu0
        %632 = vmatprep.mubr.f32.mxu0 0.0
        %633 = vmatmul.mubr.f32.gmra.mxu0 %v511
        %v634 = vpop.f32.mrf.mxu0
        %v635 = vadd.f32 0.0, %v634
        %v636 = vpop.f32.mrf.mxu0
        %637 = vmatprep.mubr.f32.mxu0 0.0
        %638 = vmatmul.mubr.f32.gmra.mxu0 %v514
        %v639 = vpop.f32.mrf.mxu0
        %v640 = vadd.f32 0.0, %v639
        %v641 = vpop.f32.mrf.mxu0
        %642 = vmatprep.mubr.f32.mxu0 0.0
        %643 = vmatmul.mubr.f32.gmra.mxu0 %v517
        %v644 = vpop.f32.mrf.mxu0
        %v645 = vadd.f32 0.0, %v644
        %v646 = vpop.f32.mrf.mxu0
        %647 = vmatprep.mubr.f32.mxu0 0.0
        %648 = vmatmul.mubr.f32.gmra.mxu0 %v520
        %v649 = vpop.f32.mrf.mxu0
        %v650 = vadd.f32 0.0, %v649
        %v651 = vpop.f32.mrf.mxu0
        %652 = vmatprep.mubr.f32.mxu0 0.0
        %653 = vmatmul.mubr.f32.gmra.mxu0 %v523
        %v654 = vpop.f32.mrf.mxu0
        %v655 = vadd.f32 0.0, %v654
        %v656 = vpop.f32.mrf.mxu0
        %657 = vmatprep.mubr.f32.mxu0 0.0
        %658 = vmatmul.mubr.f32.gmra.mxu0 %v526
        %v659 = vpop.f32.mrf.mxu0
        %v660 = vadd.f32 0.0, %v659
        %v661 = vpop.f32.mrf.mxu0
        %662 = vmatprep.mubr.f32.mxu0 0.0
        %663 = vmatmul.mubr.f32.gmra.mxu0 %v529
        %v664 = vpop.f32.mrf.mxu0
        %v665 = vadd.f32 0.0, %v664
        %v666 = vpop.f32.mrf.mxu0
        %667 = vmatprep.mubr.f32.mxu0 0.0
        %668 = vmatmul.mubr.f32.gmra.mxu0 %v532
        %v669 = vpop.f32.mrf.mxu0
        %v670 = vadd.f32 0.0, %v669
        %v671 = vpop.f32.mrf.mxu0
        %672 = vmatprep.mubr.f32.mxu0 0.0
        %673 = vmatmul.mubr.f32.gmra.mxu0 %v535
        %v674 = vpop.f32.mrf.mxu0
        %v675 = vadd.f32 0.0, %v674
        %v676 = vpop.f32.mrf.mxu0
        %677 = vmatprep.mubr.f32.mxu0 0.0
        %678 = vmatmul.mubr.f32.gmra.mxu0 %v538
        %v679 = vpop.f32.mrf.mxu0
        %v680 = vadd.f32 0.0, %v679
        %v681 = vpop.f32.mrf.mxu0
        %682 = vmatprep.mubr.f32.mxu0 0.0
        %683 = vmatmul.mubr.f32.gmra.mxu0 %v541
        %v684 = vpop.f32.mrf.mxu0
        %v685 = vadd.f32 0.0, %v684
        %v686 = vpop.f32.mrf.mxu0
        %687 = vdwg.mxu0
        %v688 = vmul.f32 %v413, %v610
        %v689 = vmul.f32 %v418, %v615
        %v690 = vmul.f32 %v423, %v620
        %v691 = vmul.f32 %v428, %v625
        %v692 = vmul.f32 %v433, %v630
        %v693 = vmul.f32 %v438, %v635
        %v694 = vmul.f32 %v443, %v640
        %v695 = vmul.f32 %v448, %v645
        %v696 = vmul.f32 %v453, %v650
        %v697 = vmul.f32 %v458, %v655
        %v698 = vmul.f32 %v463, %v660
        %v699 = vmul.f32 %v468, %v665
        %v700 = vmul.f32 %v473, %v670
        %v701 = vmul.f32 %v478, %v675
        %v702 = vmul.f32 %v483, %v680
        %v703 = vmul.f32 %v488, %v685
        %vm704 = vcmask 64512
        %v705 = vsel %vm704, %v688, 0.0
        %706 = vadd.xlane.f32.xlu0 %v705
        %v707 = vpop.xlane.xlu0 %706
        %v708 = vsel %vm704, %v689, 0.0
        %709 = vadd.xlane.f32.xlu0 %v708
        %v710 = vpop.xlane.xlu0 %709
        %v711 = vsel %vm704, %v690, 0.0
        %712 = vadd.xlane.f32.xlu0 %v711
        %v713 = vpop.xlane.xlu0 %712
        %v714 = vsel %vm704, %v691, 0.0
        %715 = vadd.xlane.f32.xlu0 %v714
        %v716 = vpop.xlane.xlu0 %715
        %v717 = vsel %vm704, %v692, 0.0
        %718 = vadd.xlane.f32.xlu0 %v717
        %v719 = vpop.xlane.xlu0 %718
        %v720 = vsel %vm704, %v693, 0.0
        %721 = vadd.xlane.f32.xlu0 %v720
        %v722 = vpop.xlane.xlu0 %721
        %v723 = vsel %vm704, %v694, 0.0
        %724 = vadd.xlane.f32.xlu0 %v723
        %v725 = vpop.xlane.xlu0 %724
        %v726 = vsel %vm704, %v695, 0.0
        %727 = vadd.xlane.f32.xlu0 %v726
        %v728 = vpop.xlane.xlu0 %727
        %v729 = vsel %vm704, %v696, 0.0
        %730 = vadd.xlane.f32.xlu0 %v729
        %v731 = vpop.xlane.xlu0 %730
        %v732 = vsel %vm704, %v697, 0.0
        %733 = vadd.xlane.f32.xlu0 %v732
        %v734 = vpop.xlane.xlu0 %733
        %v735 = vsel %vm704, %v698, 0.0
        %736 = vadd.xlane.f32.xlu0 %v735
        %v737 = vpop.xlane.xlu0 %736
        %v738 = vsel %vm704, %v699, 0.0
        %739 = vadd.xlane.f32.xlu0 %v738
        %v740 = vpop.xlane.xlu0 %739
        %v741 = vsel %vm704, %v700, 0.0
        %742 = vadd.xlane.f32.xlu0 %v741
        %v743 = vpop.xlane.xlu0 %742
        %v744 = vsel %vm704, %v701, 0.0
        %745 = vadd.xlane.f32.xlu0 %v744
        %v746 = vpop.xlane.xlu0 %745
        %v747 = vsel %vm704, %v702, 0.0
        %748 = vadd.xlane.f32.xlu0 %v747
        %v749 = vpop.xlane.xlu0 %748
        %v750 = vsel %vm704, %v703, 0.0
        %751 = vadd.xlane.f32.xlu0 %v750
        %v752 = vpop.xlane.xlu0 %751
        %vm753 = vcmask 7168
        %754 = vst.msk [vmem:[%s227] sm:$0xff] %vm753, %v707
        %755 = vst.msk [vmem:[%s227 + $0x8] sm:$0xff] %vm753, %v710
        %756 = vst.msk [vmem:[%s227 + $0x10] sm:$0xff] %vm753, %v713
        %757 = vst.msk [vmem:[%s227 + $0x18] sm:$0xff] %vm753, %v716
        %758 = vst.msk [vmem:[%s227 + $0x20] sm:$0xff] %vm753, %v719
        %759 = vst.msk [vmem:[%s227 + $0x28] sm:$0xff] %vm753, %v722
        %760 = vst.msk [vmem:[%s227 + $0x30] sm:$0xff] %vm753, %v725
        %761 = vst.msk [vmem:[%s227 + $0x38] sm:$0xff] %vm753, %v728
        %762 = vst.msk [vmem:[%s227 + $0x40] sm:$0xff] %vm753, %v731
        %763 = vst.msk [vmem:[%s227 + $0x48] sm:$0xff] %vm753, %v734
        %764 = vst.msk [vmem:[%s227 + $0x50] sm:$0xff] %vm753, %v737
        %765 = vst.msk [vmem:[%s227 + $0x58] sm:$0xff] %vm753, %v740
        %766 = vst.msk [vmem:[%s227 + $0x60] sm:$0xff] %vm753, %v743
        %767 = vst.msk [vmem:[%s227 + $0x68] sm:$0xff] %vm753, %v746
        %768 = vst.msk [vmem:[%s227 + $0x70] sm:$0xff] %vm753, %v749
        %769 = vst.msk [vmem:[%s227 + $0x78] sm:$0xff] %vm753, %v752
        %s770 = sand.u32 %s117, 1
        %s771 = sand.u32 %s117, 1
        %s772 = smul.addr %s771, 128
        %s773 = scalar_lea.vmem [#allocation2], %s772
        // Predicated region
        $region37: #{tpu_custom_call.1} parent=35 // pred_check
          %p774 = pneg %p127
        $region38: #{tpu_custom_call.1} parent=35 // pred_check_branch
          %776 = sbr.rel (%p774) target = $region40
        $region39: #{tpu_custom_call.1} parent=35 // pred_region
          %s777 = smul.u32 16, %s15
          %s778 = ssub.s32 25, %s777
          %p779 = scmp.lt.s32.totalorder %s778, 16
          %s780 = scalar_select %p779, %s778, 16
          %s781 = smul.u32 128, %s780
          %p782 = scmp.ne.s32.totalorder 0, %s781
          %s783 = smul.addr %s777, 8
          %s784 = scalar_lea.vmem %s4, %s783
          // Predicated region
          $region41: #{tpu_custom_call.1} parent=39 // pred_check
            %p785 = pneg %p782
          $region42: #{tpu_custom_call.1} parent=39 // pred_check_branch
            %787 = sbr.rel (%p785) target = $region44
          $region43: #{tpu_custom_call.1} parent=39 // pred_region
            // Predicated region
            $region45: #{tpu_custom_call.1} parent=43 // pred_check
              _
            $region46: #{tpu_custom_call.1} parent=43 // pred_check_branch
              %789 = sbr.rel (0) target = $region48
            $region47: #{tpu_custom_call.1} parent=43 // pred_region
              // Predicated region
              $region67: #{tpu_custom_call.1} parent=47 // pred_check
                _
              $region68: #{tpu_custom_call.1} parent=47 // pred_check_branch
                %869 = sbr.rel (0) target = $region70
              $region69: #{tpu_custom_call.1} parent=47 // pred_region
                %s870 = sshrl.u32 %s780, 4
                // While loop
                $region71: #{tpu_custom_call.1} parent=69 // loop_pre_header
                  _
                $region72: #{tpu_custom_call.1} parent=69 // loop_header
                  %s872 = sphi 0, %s874
                  %p873 = scmp.ge.s32.totalorder %s872, %s870
                  %s877 = sphi 0, %s914
                  %s878 = sphi %s773, %s917
                  %s879 = sphi %s784, %s918
                $region73: #{tpu_custom_call.1} parent=69 // loop_header_branch
                  %876 = sbr.rel (%p873) target = $region77
                $region74: #{tpu_custom_call.1} parent=69 // loop_body
                  %v880 = vld [vmem:[%s878] sm:$0xff]
                  %881 = vst [vmem:[%s879] sm:$0xff] %v880
                  %v882 = vld [vmem:[%s878 + $0x8] sm:$0xff]
                  %883 = vst [vmem:[%s879 + $0x8] sm:$0xff] %v882
                  %v884 = vld [vmem:[%s878 + $0x10] sm:$0xff]
                  %885 = vst [vmem:[%s879 + $0x10] sm:$0xff] %v884
                  %v886 = vld [vmem:[%s878 + $0x18] sm:$0xff]
                  %887 = vst [vmem:[%s879 + $0x18] sm:$0xff] %v886
                  %v888 = vld [vmem:[%s878 + $0x20] sm:$0xff]
                  %889 = vst [vmem:[%s879 + $0x20] sm:$0xff] %v888
                  %v890 = vld [vmem:[%s878 + $0x28] sm:$0xff]
                  %891 = vst [vmem:[%s879 + $0x28] sm:$0xff] %v890
                  %v892 = vld [vmem:[%s878 + $0x30] sm:$0xff]
                  %893 = vst [vmem:[%s879 + $0x30] sm:$0xff] %v892
                  %v894 = vld [vmem:[%s878 + $0x38] sm:$0xff]
                  %895 = vst [vmem:[%s879 + $0x38] sm:$0xff] %v894
                  %v896 = vld [vmem:[%s878 + $0x40] sm:$0xff]
                  %897 = vst [vmem:[%s879 + $0x40] sm:$0xff] %v896
                  %v898 = vld [vmem:[%s878 + $0x48] sm:$0xff]
                  %899 = vst [vmem:[%s879 + $0x48] sm:$0xff] %v898
                  %v900 = vld [vmem:[%s878 + $0x50] sm:$0xff]
                  %901 = vst [vmem:[%s879 + $0x50] sm:$0xff] %v900
                  %v902 = vld [vmem:[%s878 + $0x58] sm:$0xff]
                  %903 = vst [vmem:[%s879 + $0x58] sm:$0xff] %v902
                  %v904 = vld [vmem:[%s878 + $0x60] sm:$0xff]
                  %905 = vst [vmem:[%s879 + $0x60] sm:$0xff] %v904
                  %v906 = vld [vmem:[%s878 + $0x68] sm:$0xff]
                  %907 = vst [vmem:[%s879 + $0x68] sm:$0xff] %v906
                  %v908 = vld [vmem:[%s878 + $0x70] sm:$0xff]
                  %909 = vst [vmem:[%s879 + $0x70] sm:$0xff] %v908
                  %v910 = vld [vmem:[%s878 + $0x78] sm:$0xff]
                  %911 = vst [vmem:[%s879 + $0x78] sm:$0xff] %v910
                  %s912 = sadd.s32 1, %s877
                  %p913 = scmp.ge.s32.totalorder %s912, %s870
                  %s914 = scalar_select %p913, 0, %s912
                  %s915 = smul.u32 %s914, 128
                  %s916 = smul.u32 %s914, 128
                  %s917 = scalar_lea.vmem %s773, %s915 [#allocation2]
                  %s918 = scalar_lea.vmem %s784, %s916
                $region75: #{tpu_custom_call.1} parent=69 // loop_footer
                  %s874 = sadd.s32 %s872, 1
                $region76: #{tpu_custom_call.1} parent=69 // loop_footer_branch
                  %871 = sbr.rel target = $region72
                $region77: #{tpu_custom_call.1} parent=69 // loop_exit
                  _
                %s919 = sshrl.u32 %s780, 4
                %s920 = sand.u32 %s780, 15
                %s921 = smul.u32 %s919, 16
                %s922 = smul.u32 8, %s921
                %s923 = scalar_lea.vmem %s773, %s922 [#allocation2]
                %s924 = smul.u32 8, %s921
                %s925 = scalar_lea.vmem %s784, %s924
                // While loop
                $region78: #{tpu_custom_call.1} parent=69 // loop_pre_header
                  _
                $region79: #{tpu_custom_call.1} parent=69 // loop_header
                  %s927 = sphi 0, %s929
                  %p928 = scmp.ge.s32.totalorder %s927, %s920
                  %s932 = sphi 0, %s939
                  %s933 = sphi %s923, %s942
                  %s934 = sphi %s925, %s943
                $region80: #{tpu_custom_call.1} parent=69 // loop_header_branch
                  %931 = sbr.rel (%p928) target = $region84
                $region81: #{tpu_custom_call.1} parent=69 // loop_body
                  %v935 = vld [vmem:[%s933] sm:$0xff]
                  %936 = vst [vmem:[%s934] sm:$0xff] %v935
                  %s937 = sadd.s32 1, %s932
                  %p938 = scmp.ge.s32.totalorder %s937, %s920
                  %s939 = scalar_select %p938, 0, %s937
                  %s940 = smul.u32 %s939, 8
                  %s941 = smul.u32 %s939, 8
                  %s942 = scalar_lea.vmem %s923, %s940 [#allocation2]
                  %s943 = scalar_lea.vmem %s925, %s941
                $region82: #{tpu_custom_call.1} parent=69 // loop_footer
                  %s929 = sadd.s32 %s927, 1
                $region83: #{tpu_custom_call.1} parent=69 // loop_footer_branch
                  %926 = sbr.rel target = $region79
                $region84: #{tpu_custom_call.1} parent=69 // loop_exit
                  _
              $region70: #{tpu_custom_call.1} parent=47 // pred_fallthru
                _
              // Predicated region
              $region85: #{tpu_custom_call.1} parent=47 // pred_check
                _
              $region86: #{tpu_custom_call.1} parent=47 // pred_check_branch
                %945 = sbr.rel target = $region88
              $region87: #{tpu_custom_call.1} parent=47 // pred_region
                _
              $region88: #{tpu_custom_call.1} parent=47 // pred_fallthru
                _
            $region48: #{tpu_custom_call.1} parent=43 // pred_fallthru
              _
            // Predicated region
            $region49: #{tpu_custom_call.1} parent=43 // pred_check
              _
            $region50: #{tpu_custom_call.1} parent=43 // pred_check_branch
              %791 = sbr.rel target = $region52
            $region51: #{tpu_custom_call.1} parent=43 // pred_region
              %s793 = ssub.s32 256, 1
              %s794 = sshrl.u32 %s780, 4
              // While loop
              $region53: #{tpu_custom_call.1} parent=51 // loop_pre_header
                _
              $region54: #{tpu_custom_call.1} parent=51 // loop_header
                %s796 = sphi 0, %s798
                %p797 = scmp.ge.s32.totalorder %s796, %s794
                %s801 = sphi 0, %s838
                %s802 = sphi %s773, %s841
                %s803 = sphi %s784, %s842
              $region55: #{tpu_custom_call.1} parent=51 // loop_header_branch
                %800 = sbr.rel (%p797) target = $region59
              $region56: #{tpu_custom_call.1} parent=51 // loop_body
                %v804 = vld [vmem:[%s802] sm:%s793]
                %805 = vst [vmem:[%s803] sm:%s793] %v804
                %v806 = vld [vmem:[%s802 + $0x8] sm:%s793]
                %807 = vst [vmem:[%s803 + $0x8] sm:%s793] %v806
                %v808 = vld [vmem:[%s802 + $0x10] sm:%s793]
                %809 = vst [vmem:[%s803 + $0x10] sm:%s793] %v808
                %v810 = vld [vmem:[%s802 + $0x18] sm:%s793]
                %811 = vst [vmem:[%s803 + $0x18] sm:%s793] %v810
                %v812 = vld [vmem:[%s802 + $0x20] sm:%s793]
                %813 = vst [vmem:[%s803 + $0x20] sm:%s793] %v812
                %v814 = vld [vmem:[%s802 + $0x28] sm:%s793]
                %815 = vst [vmem:[%s803 + $0x28] sm:%s793] %v814
                %v816 = vld [vmem:[%s802 + $0x30] sm:%s793]
                %817 = vst [vmem:[%s803 + $0x30] sm:%s793] %v816
                %v818 = vld [vmem:[%s802 + $0x38] sm:%s793]
                %819 = vst [vmem:[%s803 + $0x38] sm:%s793] %v818
                %v820 = vld [vmem:[%s802 + $0x40] sm:%s793]
                %821 = vst [vmem:[%s803 + $0x40] sm:%s793] %v820
                %v822 = vld [vmem:[%s802 + $0x48] sm:%s793]
                %823 = vst [vmem:[%s803 + $0x48] sm:%s793] %v822
                %v824 = vld [vmem:[%s802 + $0x50] sm:%s793]
                %825 = vst [vmem:[%s803 + $0x50] sm:%s793] %v824
                %v826 = vld [vmem:[%s802 + $0x58] sm:%s793]
                %827 = vst [vmem:[%s803 + $0x58] sm:%s793] %v826
                %v828 = vld [vmem:[%s802 + $0x60] sm:%s793]
                %829 = vst [vmem:[%s803 + $0x60] sm:%s793] %v828
                %v830 = vld [vmem:[%s802 + $0x68] sm:%s793]
                %831 = vst [vmem:[%s803 + $0x68] sm:%s793] %v830
                %v832 = vld [vmem:[%s802 + $0x70] sm:%s793]
                %833 = vst [vmem:[%s803 + $0x70] sm:%s793] %v832
                %v834 = vld [vmem:[%s802 + $0x78] sm:%s793]
                %835 = vst [vmem:[%s803 + $0x78] sm:%s793] %v834
                %s836 = sadd.s32 1, %s801
                %p837 = scmp.ge.s32.totalorder %s836, %s794
                %s838 = scalar_select %p837, 0, %s836
                %s839 = smul.u32 %s838, 128
                %s840 = smul.u32 %s838, 128
                %s841 = scalar_lea.vmem %s773, %s839 [#allocation2]
                %s842 = scalar_lea.vmem %s784, %s840
              $region57: #{tpu_custom_call.1} parent=51 // loop_footer
                %s798 = sadd.s32 %s796, 1
              $region58: #{tpu_custom_call.1} parent=51 // loop_footer_branch
                %795 = sbr.rel target = $region54
              $region59: #{tpu_custom_call.1} parent=51 // loop_exit
                _
              %s843 = sshrl.u32 %s780, 4
              %s844 = sand.u32 %s780, 15
              %s845 = smul.u32 %s843, 16
              %s846 = smul.u32 8, %s845
              %s847 = scalar_lea.vmem %s773, %s846 [#allocation2]
              %s848 = smul.u32 8, %s845
              %s849 = scalar_lea.vmem %s784, %s848
              // While loop
              $region60: #{tpu_custom_call.1} parent=51 // loop_pre_header
                _
              $region61: #{tpu_custom_call.1} parent=51 // loop_header
                %s851 = sphi 0, %s853
                %p852 = scmp.ge.s32.totalorder %s851, %s844
                %s856 = sphi 0, %s863
                %s857 = sphi %s847, %s866
                %s858 = sphi %s849, %s867
              $region62: #{tpu_custom_call.1} parent=51 // loop_header_branch
                %855 = sbr.rel (%p852) target = $region66
              $region63: #{tpu_custom_call.1} parent=51 // loop_body
                %v859 = vld [vmem:[%s857] sm:%s793]
                %860 = vst [vmem:[%s858] sm:%s793] %v859
                %s861 = sadd.s32 1, %s856
                %p862 = scmp.ge.s32.totalorder %s861, %s844
                %s863 = scalar_select %p862, 0, %s861
                %s864 = smul.u32 %s863, 8
                %s865 = smul.u32 %s863, 8
                %s866 = scalar_lea.vmem %s847, %s864 [#allocation2]
                %s867 = scalar_lea.vmem %s849, %s865
              $region64: #{tpu_custom_call.1} parent=51 // loop_footer
                %s853 = sadd.s32 %s851, 1
              $region65: #{tpu_custom_call.1} parent=51 // loop_footer_branch
                %850 = sbr.rel target = $region61
              $region66: #{tpu_custom_call.1} parent=51 // loop_exit
                _
            $region52: #{tpu_custom_call.1} parent=43 // pred_fallthru
              _
          $region44: #{tpu_custom_call.1} parent=39 // pred_fallthru
            _
          %946 = vnop
        $region40: #{tpu_custom_call.1} parent=35 // pred_fallthru
          _
      $region36: #{tpu_custom_call.1} parent=5 // pred_fallthru
        _
      %p947 = scmp.le.s32.totalorder 2, %s10
      // Predicated region
      $region89: #{tpu_custom_call.1} parent=5 // pred_check
        %p948 = pneg %p947
      $region90: #{tpu_custom_call.1} parent=5 // pred_check_branch
        %950 = sbr.rel (%p948) target = $region92
      $region91: #{tpu_custom_call.1} parent=5 // pred_region
        %s951 = ssub.s32 %s10, 2
        // Predicated region
        $region93: #{tpu_custom_call.1} parent=91 // pred_check
          %p952 = pneg %p133
        $region94: #{tpu_custom_call.1} parent=91 // pred_check_branch
          %954 = sbr.rel (%p952) target = $region96
        $region95: #{tpu_custom_call.1} parent=91 // pred_region
          %s955 = sand.u32 %s118, 1
          %s956 = sand.u32 %s118, 1
          %s957 = smul.addr %s956, 128
          %s958 = scalar_lea.vmem [#allocation2], %s957
        $region96: #{tpu_custom_call.1} parent=91 // pred_fallthru
          _
      $region92: #{tpu_custom_call.1} parent=5 // pred_fallthru
        _
    $region6: #{tpu_custom_call.1} parent=1 // loop_footer
      %s14 = sadd.s32 1, %s10
    $region7: #{tpu_custom_call.1} parent=1 // loop_footer_branch
      %9 = sbr.rel target = $region3
    $region8: #{tpu_custom_call.1} parent=1 // loop_exit
      _

</llo_original>
